<compile_context>
chip_gen: v5e
topology: v5e:2x2
jax: 0.10.0
libtpu: 0.0.40
codegen_flags: <defaults>
</compile_context>

<pallas_src>
import math

import jax
import jax.numpy as jnp
import numpy as np
from jax.experimental import pallas as pl
from jax.experimental.pallas import tpu as pltpu

IN_CHANNELS = 16
OUT_CHANNELS = 1      # Alpha always projects to a single channel


# ------------------------- Pallas kernel -------------------------
def _alpha_kernel(w_ref, b_ref, x_ref, out_ref):
    """Fused 1x1 EqualizedConv2d + sigmoid for the whole batch in one shot.

    w_ref:   (C,)        SMEM  raw (unscaled) conv weights
    b_ref:   (1,)        SMEM  bias scalar
    x_ref:   (B, C, HW)  VMEM  full input block
    out_ref: (B, 1, HW)  VMEM  full output block
    """
    C = x_ref.shape[1]
    scale = 1.0 / math.sqrt(C)   # equalized-lr scale: gain=1, 1x1 kernel => fan_in = C

    # VPU path: scalar-broadcast multiply + accumulate over channels (unrolled, C is tiny).
    acc = x_ref[:, pl.ds(0, 1), :] * w_ref[0]                    # (B, 1, HW) f32
    for c in range(1, C):
        acc = acc + x_ref[:, pl.ds(c, 1), :] * w_ref[c]

    out_ref[...] = jax.nn.sigmoid(acc * scale + b_ref[0])


# ------------------------- wrapper -------------------------
def alpha_forward(x, params):
    """x: (B, Cin, H, W) -> (B, 1, H, W), matching Alpha.forward."""
    B, C, H, W = x.shape
    HW = H * W

    x_flat = x.reshape(B, C, HW)          # free contiguous reshape
    w_flat = params['w'].reshape(C)       # raw weights; equalized-lr scale applied in-kernel
    b = params['b']                       # (1,)

    cost = pl.CostEstimate(
        flops=2 * B * C * HW + 2 * B * HW,
        transcendentals=B * HW,                          # sigmoid
        bytes_accessed=4 * (B * C * HW + B * HW + C + 1),
    )

    out_flat = pl.pallas_call(
        _alpha_kernel,
        out_shape=jax.ShapeDtypeStruct((B, OUT_CHANNELS, HW), jnp.float32),
        in_specs=[
            pl.BlockSpec(memory_space=pltpu.MemorySpace.SMEM),   # weights (C,)
            pl.BlockSpec(memory_space=pltpu.MemorySpace.SMEM),   # bias (1,)
            pl.BlockSpec(memory_space=pltpu.MemorySpace.VMEM),   # x (B, C, HW), one block
        ],
        out_specs=pl.BlockSpec(memory_space=pltpu.MemorySpace.VMEM),
        cost_estimate=cost,
    )(w_flat, b, x_flat)

    return out_flat.reshape(B, OUT_CHANNELS, H, W)


# ------------------------- parameter init (EqualizedConv2d, gain=1) -------------------------
def init_params(key, in_channels):
    kw, kb = jax.random.split(key, 2)
    # Weight ~ N(0,1); the equalized-lr scale is applied at forward time (inside the kernel).
    w = jax.random.normal(kw, (OUT_CHANNELS, in_channels, 1, 1), jnp.float32)
    b = 0.1 * jax.random.normal(kb, (OUT_CHANNELS,), jnp.float32)
    return {'w': w, 'b': b}


# ------------------------- pure-JAX reference -------------------------
def reference_forward(x, params):
    B, C, H, W = x.shape
    scale = 1.0 / np.sqrt(C)
    w_scaled = params['w'].reshape(OUT_CHANNELS, C) * scale
    y = jnp.einsum('oc,bchw->bohw', w_scaled, x) + params['b'][None, :, None, None]
    return jax.nn.sigmoid(y)


if __name__ == "__main__":
    key = jax.random.PRNGKey(0)
    kx, kp = jax.random.split(key, 2)
    B, C, H, W = 2, IN_CHANNELS, 16, 16

    x = jax.random.normal(kx, (B, C, H, W), jnp.float32)
    params = init_params(kp, C)

    fwd = jax.jit(alpha_forward)
    out = jax.block_until_ready(fwd(x, params))

    ref = reference_forward(x, params)
    np.testing.assert_allclose(np.asarray(out), np.asarray(ref), rtol=1e-5, atol=1e-5)
    assert out.shape == (B, OUT_CHANNELS, H, W)
    print("KERNEL_OK")
</pallas_src>

<mosaic_0001>
module attributes {stable_mosaic.version = 11 : i64} {
  func.func @_alpha_kernel(%arg0: memref<16xf32, #tpu.memory_space<smem>>, %arg1: memref<1xf32, #tpu.memory_space<smem>>, %arg2: memref<2x16x256xf32, #tpu.memory_space<vmem>>, %arg3: memref<2x1x256xf32, #tpu.memory_space<vmem>>) attributes {dimension_semantics = [], scalar_prefetch = 0 : i64, scratch_operands = 0 : i64, tpu.core_type = #tpu.core_type<tc>} {
    %c0 = arith.constant 0 : index
    %c0_0 = arith.constant 0 : index
    %c0_1 = arith.constant 0 : index
    %0 = vector.load %arg2[%c0, %c0_0, %c0_1] : memref<2x16x256xf32, #tpu.memory_space<vmem>>, vector<2x1x256xf32>
    %c0_2 = arith.constant 0 : index
    %1 = memref.load %arg0[%c0_2] : memref<16xf32, #tpu.memory_space<smem>>
    %2 = vector.broadcast %1 : f32 to vector<2x1x256xf32>
    %3 = arith.mulf %0, %2 : vector<2x1x256xf32>
    %c0_3 = arith.constant 0 : index
    %c1 = arith.constant 1 : index
    %c0_4 = arith.constant 0 : index
    %4 = vector.load %arg2[%c0_3, %c1, %c0_4] : memref<2x16x256xf32, #tpu.memory_space<vmem>>, vector<2x1x256xf32>
    %c1_5 = arith.constant 1 : index
    %5 = memref.load %arg0[%c1_5] : memref<16xf32, #tpu.memory_space<smem>>
    %6 = vector.broadcast %5 : f32 to vector<2x1x256xf32>
    %7 = arith.mulf %4, %6 : vector<2x1x256xf32>
    %8 = arith.addf %3, %7 : vector<2x1x256xf32>
    %c0_6 = arith.constant 0 : index
    %c2 = arith.constant 2 : index
    %c0_7 = arith.constant 0 : index
    %9 = vector.load %arg2[%c0_6, %c2, %c0_7] : memref<2x16x256xf32, #tpu.memory_space<vmem>>, vector<2x1x256xf32>
    %c2_8 = arith.constant 2 : index
    %10 = memref.load %arg0[%c2_8] : memref<16xf32, #tpu.memory_space<smem>>
    %11 = vector.broadcast %10 : f32 to vector<2x1x256xf32>
    %12 = arith.mulf %9, %11 : vector<2x1x256xf32>
    %13 = arith.addf %8, %12 : vector<2x1x256xf32>
    %c0_9 = arith.constant 0 : index
    %c3 = arith.constant 3 : index
    %c0_10 = arith.constant 0 : index
    %14 = vector.load %arg2[%c0_9, %c3, %c0_10] : memref<2x16x256xf32, #tpu.memory_space<vmem>>, vector<2x1x256xf32>
    %c3_11 = arith.constant 3 : index
    %15 = memref.load %arg0[%c3_11] : memref<16xf32, #tpu.memory_space<smem>>
    %16 = vector.broadcast %15 : f32 to vector<2x1x256xf32>
    %17 = arith.mulf %14, %16 : vector<2x1x256xf32>
    %18 = arith.addf %13, %17 : vector<2x1x256xf32>
    %c0_12 = arith.constant 0 : index
    %c4 = arith.constant 4 : index
    %c0_13 = arith.constant 0 : index
    %19 = vector.load %arg2[%c0_12, %c4, %c0_13] : memref<2x16x256xf32, #tpu.memory_space<vmem>>, vector<2x1x256xf32>
    %c4_14 = arith.constant 4 : index
    %20 = memref.load %arg0[%c4_14] : memref<16xf32, #tpu.memory_space<smem>>
    %21 = vector.broadcast %20 : f32 to vector<2x1x256xf32>
    %22 = arith.mulf %19, %21 : vector<2x1x256xf32>
    %23 = arith.addf %18, %22 : vector<2x1x256xf32>
    %c0_15 = arith.constant 0 : index
    %c5 = arith.constant 5 : index
    %c0_16 = arith.constant 0 : index
    %24 = vector.load %arg2[%c0_15, %c5, %c0_16] : memref<2x16x256xf32, #tpu.memory_space<vmem>>, vector<2x1x256xf32>
    %c5_17 = arith.constant 5 : index
    %25 = memref.load %arg0[%c5_17] : memref<16xf32, #tpu.memory_space<smem>>
    %26 = vector.broadcast %25 : f32 to vector<2x1x256xf32>
    %27 = arith.mulf %24, %26 : vector<2x1x256xf32>
    %28 = arith.addf %23, %27 : vector<2x1x256xf32>
    %c0_18 = arith.constant 0 : index
    %c6 = arith.constant 6 : index
    %c0_19 = arith.constant 0 : index
    %29 = vector.load %arg2[%c0_18, %c6, %c0_19] : memref<2x16x256xf32, #tpu.memory_space<vmem>>, vector<2x1x256xf32>
    %c6_20 = arith.constant 6 : index
    %30 = memref.load %arg0[%c6_20] : memref<16xf32, #tpu.memory_space<smem>>
    %31 = vector.broadcast %30 : f32 to vector<2x1x256xf32>
    %32 = arith.mulf %29, %31 : vector<2x1x256xf32>
    %33 = arith.addf %28, %32 : vector<2x1x256xf32>
    %c0_21 = arith.constant 0 : index
    %c7 = arith.constant 7 : index
    %c0_22 = arith.constant 0 : index
    %34 = vector.load %arg2[%c0_21, %c7, %c0_22] : memref<2x16x256xf32, #tpu.memory_space<vmem>>, vector<2x1x256xf32>
    %c7_23 = arith.constant 7 : index
    %35 = memref.load %arg0[%c7_23] : memref<16xf32, #tpu.memory_space<smem>>
    %36 = vector.broadcast %35 : f32 to vector<2x1x256xf32>
    %37 = arith.mulf %34, %36 : vector<2x1x256xf32>
    %38 = arith.addf %33, %37 : vector<2x1x256xf32>
    %c0_24 = arith.constant 0 : index
    %c8 = arith.constant 8 : index
    %c0_25 = arith.constant 0 : index
    %39 = vector.load %arg2[%c0_24, %c8, %c0_25] : memref<2x16x256xf32, #tpu.memory_space<vmem>>, vector<2x1x256xf32>
    %c8_26 = arith.constant 8 : index
    %40 = memref.load %arg0[%c8_26] : memref<16xf32, #tpu.memory_space<smem>>
    %41 = vector.broadcast %40 : f32 to vector<2x1x256xf32>
    %42 = arith.mulf %39, %41 : vector<2x1x256xf32>
    %43 = arith.addf %38, %42 : vector<2x1x256xf32>
    %c0_27 = arith.constant 0 : index
    %c9 = arith.constant 9 : index
    %c0_28 = arith.constant 0 : index
    %44 = vector.load %arg2[%c0_27, %c9, %c0_28] : memref<2x16x256xf32, #tpu.memory_space<vmem>>, vector<2x1x256xf32>
    %c9_29 = arith.constant 9 : index
    %45 = memref.load %arg0[%c9_29] : memref<16xf32, #tpu.memory_space<smem>>
    %46 = vector.broadcast %45 : f32 to vector<2x1x256xf32>
    %47 = arith.mulf %44, %46 : vector<2x1x256xf32>
    %48 = arith.addf %43, %47 : vector<2x1x256xf32>
    %c0_30 = arith.constant 0 : index
    %c10 = arith.constant 10 : index
    %c0_31 = arith.constant 0 : index
    %49 = vector.load %arg2[%c0_30, %c10, %c0_31] : memref<2x16x256xf32, #tpu.memory_space<vmem>>, vector<2x1x256xf32>
    %c10_32 = arith.constant 10 : index
    %50 = memref.load %arg0[%c10_32] : memref<16xf32, #tpu.memory_space<smem>>
    %51 = vector.broadcast %50 : f32 to vector<2x1x256xf32>
    %52 = arith.mulf %49, %51 : vector<2x1x256xf32>
    %53 = arith.addf %48, %52 : vector<2x1x256xf32>
    %c0_33 = arith.constant 0 : index
    %c11 = arith.constant 11 : index
    %c0_34 = arith.constant 0 : index
    %54 = vector.load %arg2[%c0_33, %c11, %c0_34] : memref<2x16x256xf32, #tpu.memory_space<vmem>>, vector<2x1x256xf32>
    %c11_35 = arith.constant 11 : index
    %55 = memref.load %arg0[%c11_35] : memref<16xf32, #tpu.memory_space<smem>>
    %56 = vector.broadcast %55 : f32 to vector<2x1x256xf32>
    %57 = arith.mulf %54, %56 : vector<2x1x256xf32>
    %58 = arith.addf %53, %57 : vector<2x1x256xf32>
    %c0_36 = arith.constant 0 : index
    %c12 = arith.constant 12 : index
    %c0_37 = arith.constant 0 : index
    %59 = vector.load %arg2[%c0_36, %c12, %c0_37] : memref<2x16x256xf32, #tpu.memory_space<vmem>>, vector<2x1x256xf32>
    %c12_38 = arith.constant 12 : index
    %60 = memref.load %arg0[%c12_38] : memref<16xf32, #tpu.memory_space<smem>>
    %61 = vector.broadcast %60 : f32 to vector<2x1x256xf32>
    %62 = arith.mulf %59, %61 : vector<2x1x256xf32>
    %63 = arith.addf %58, %62 : vector<2x1x256xf32>
    %c0_39 = arith.constant 0 : index
    %c13 = arith.constant 13 : index
    %c0_40 = arith.constant 0 : index
    %64 = vector.load %arg2[%c0_39, %c13, %c0_40] : memref<2x16x256xf32, #tpu.memory_space<vmem>>, vector<2x1x256xf32>
    %c13_41 = arith.constant 13 : index
    %65 = memref.load %arg0[%c13_41] : memref<16xf32, #tpu.memory_space<smem>>
    %66 = vector.broadcast %65 : f32 to vector<2x1x256xf32>
    %67 = arith.mulf %64, %66 : vector<2x1x256xf32>
    %68 = arith.addf %63, %67 : vector<2x1x256xf32>
    %c0_42 = arith.constant 0 : index
    %c14 = arith.constant 14 : index
    %c0_43 = arith.constant 0 : index
    %69 = vector.load %arg2[%c0_42, %c14, %c0_43] : memref<2x16x256xf32, #tpu.memory_space<vmem>>, vector<2x1x256xf32>
    %c14_44 = arith.constant 14 : index
    %70 = memref.load %arg0[%c14_44] : memref<16xf32, #tpu.memory_space<smem>>
    %71 = vector.broadcast %70 : f32 to vector<2x1x256xf32>
    %72 = arith.mulf %69, %71 : vector<2x1x256xf32>
    %73 = arith.addf %68, %72 : vector<2x1x256xf32>
    %c0_45 = arith.constant 0 : index
    %c15 = arith.constant 15 : index
    %c0_46 = arith.constant 0 : index
    %74 = vector.load %arg2[%c0_45, %c15, %c0_46] : memref<2x16x256xf32, #tpu.memory_space<vmem>>, vector<2x1x256xf32>
    %c15_47 = arith.constant 15 : index
    %75 = memref.load %arg0[%c15_47] : memref<16xf32, #tpu.memory_space<smem>>
    %76 = vector.broadcast %75 : f32 to vector<2x1x256xf32>
    %77 = arith.mulf %74, %76 : vector<2x1x256xf32>
    %78 = arith.addf %73, %77 : vector<2x1x256xf32>
    %cst = arith.constant 2.500000e-01 : f32
    %79 = vector.broadcast %cst : f32 to vector<2x1x256xf32>
    %80 = arith.mulf %78, %79 : vector<2x1x256xf32>
    %c0_48 = arith.constant 0 : index
    %81 = memref.load %arg1[%c0_48] : memref<1xf32, #tpu.memory_space<smem>>
    %82 = vector.broadcast %81 : f32 to vector<2x1x256xf32>
    %83 = arith.addf %80, %82 : vector<2x1x256xf32>
    %84 = arith.negf %83 : vector<2x1x256xf32>
    %85 = math.exp %84 : vector<2x1x256xf32>
    %cst_49 = arith.constant 1.000000e+00 : f32
    %86 = vector.broadcast %cst_49 : f32 to vector<2x1x256xf32>
    %87 = arith.addf %86, %85 : vector<2x1x256xf32>
    %88 = arith.divf %86, %87 : vector<2x1x256xf32>
    %c0_50 = arith.constant 0 : index
    %c0_51 = arith.constant 0 : index
    %c0_52 = arith.constant 0 : index
    %89 = vector.load %arg3[%c0_50, %c0_51, %c0_52] : memref<2x1x256xf32, #tpu.memory_space<vmem>>, vector<2x1x256xf32>
    tpu.vector_store %arg3[%c0_50, %c0_51, %c0_52], %88 {strides = array<i32>} : memref<2x1x256xf32, #tpu.memory_space<vmem>>, vector<2x1x256xf32>,
    return
  }
}

</mosaic_0001>

<llo_original>
// kernel: alpha_forward.1
$region0: #{alpha_forward.1}
  #allocation0 [shape = 'u32[]', space=smem, size = 0x4, offset = 0x4, fixed_abs, tag = 'smem constant byte address 0x4 - core index']
  #allocation1 [shape = 'u32[72,128]{1,0:T(1,128)}', space=vmem, size = 0x9000, scoped, tag = 'internal scratch']
  #allocation2 [shape = 'f32[1]{0:T(128)S(6)}', space=smem, size = 0x200, scoped, tag = 'scoped memory for alpha_forward.1']
  %s0 = inlined_call_operand.vmem [shape: f32[16], index: 0, kind: input, shape index: {}]
  %s1 = inlined_call_operand.<no memory space> [shape: f32[1], index: 1, kind: input, shape index: {}]
  %s2 = inlined_call_operand.vmem [shape: f32[2,16,256], index: 2, kind: input, shape index: {}]
  %s3 = inlined_call_operand.vmem [shape: f32[2,1,256], index: 3, kind: output, shape index: {}]
  %s4 = sld [smem:[#allocation0]]
  $region26: #{alpha_forward.1} parent=0
    _
  %s6 = ssub.s32 1, %s4
  %s7 = scalar_select 0, %s6, %s4
  %8 = sst [smem:[#allocation2]] %s1
  $region1: #{alpha_forward.1} parent=0
    #allocation3 [shape = 'u8[512]{0}', space=smem, size = 0x200, scoped, tag = 'input window, operand 0, single buffered']
    #allocation4 [shape = 's32[1]{0}', space=sflag, size = 0x4, scoped, tag = 'scoped memory for alpha_forward.1']
    %9 = vsyncpa [#allocation4], 0
    // Predicated region
    $region2: #{alpha_forward.1} parent=1 // pred_check
      _
    $region3: #{alpha_forward.1} parent=1 // pred_check_branch
      %11 = sbr.rel (0) target = $region5
    $region4: #{alpha_forward.1} parent=1 // pred_region
      %13 = vsyncadd [#allocation4], 0
      %s15 = sshll.u32 %s0, 4
      %s16 = int_to_ptr.vmem [resolvable:$true] %s15
      %18 = dma.vmem_to_smem %s16, 16, [#allocation3], [#allocation4]
    $region5: #{alpha_forward.1} parent=1 // pred_fallthru
      _
    // Predicated region
    $region6: #{alpha_forward.1} parent=1 // pred_check
      _
    $region7: #{alpha_forward.1} parent=1 // pred_check_branch
      %20 = sbr.rel (0) target = $region9
    $region8: #{alpha_forward.1} parent=1 // pred_region
      _
    $region9: #{alpha_forward.1} parent=1 // pred_fallthru
      _
    // Predicated region
    $region10: #{alpha_forward.1} parent=1 // pred_check
      _
    $region11: #{alpha_forward.1} parent=1 // pred_check_branch
      %22 = sbr.rel (0) target = $region13
    $region12: #{alpha_forward.1} parent=1 // pred_region
      _
    $region13: #{alpha_forward.1} parent=1 // pred_fallthru
      _
    // Predicated region
    $region14: #{alpha_forward.1} parent=1 // pred_check
      _
    $region15: #{alpha_forward.1} parent=1 // pred_check_branch
      %24 = sbr.rel (0) target = $region17
    $region16: #{alpha_forward.1} parent=1 // pred_region
      %26 = dma.done [#allocation4], 16
    $region17: #{alpha_forward.1} parent=1 // pred_fallthru
      _
    %27 = sfence
    %v28 = vld [vmem:[%s2] ss:$8 sm:$0x3]
    %s29 = scalar_lea.vmem %s2, 32
    %v30 = vld [vmem:[%s29] ss:$8 sm:$0x3]
    %s31 = sld [smem:[#allocation3]]
    %v32 = vstv %s31
    %v33 = vmul.f32 %v28, %v32
    %v34 = vmul.f32 %v30, %v32
    %s35 = scalar_lea.vmem %s2, 1
    %v36 = vld [vmem:[%s35] ss:$8 sm:$0x3]
    %s37 = scalar_lea.vmem %s2, 33
    %v38 = vld [vmem:[%s37] ss:$8 sm:$0x3]
    %s39 = sld [smem:[#allocation3 + $0x1]]
    %v40 = vstv %s39
    %v41 = vmul.f32 %v36, %v40
    %v42 = vmul.f32 %v38, %v40
    %v43 = vadd.f32 %v33, %v41
    %v44 = vadd.f32 %v34, %v42
    %s45 = scalar_lea.vmem %s2, 2
    %v46 = vld [vmem:[%s45] ss:$8 sm:$0x3]
    %s47 = scalar_lea.vmem %s2, 34
    %v48 = vld [vmem:[%s47] ss:$8 sm:$0x3]
    %s49 = sld [smem:[#allocation3 + $0x2]]
    %v50 = vstv %s49
    %v51 = vmul.f32 %v46, %v50
    %v52 = vmul.f32 %v48, %v50
    %v53 = vadd.f32 %v43, %v51
    %v54 = vadd.f32 %v44, %v52
    %s55 = scalar_lea.vmem %s2, 3
    %v56 = vld [vmem:[%s55] ss:$8 sm:$0x3]
    %s57 = scalar_lea.vmem %s2, 35
    %v58 = vld [vmem:[%s57] ss:$8 sm:$0x3]
    %s59 = sld [smem:[#allocation3 + $0x3]]
    %v60 = vstv %s59
    %v61 = vmul.f32 %v56, %v60
    %v62 = vmul.f32 %v58, %v60
    %v63 = vadd.f32 %v53, %v61
    %v64 = vadd.f32 %v54, %v62
    %s65 = scalar_lea.vmem %s2, 4
    %v66 = vld [vmem:[%s65] ss:$8 sm:$0x3]
    %s67 = scalar_lea.vmem %s2, 36
    %v68 = vld [vmem:[%s67] ss:$8 sm:$0x3]
    %s69 = sld [smem:[#allocation3 + $0x4]]
    %v70 = vstv %s69
    %v71 = vmul.f32 %v66, %v70
    %v72 = vmul.f32 %v68, %v70
    %v73 = vadd.f32 %v63, %v71
    %v74 = vadd.f32 %v64, %v72
    %s75 = scalar_lea.vmem %s2, 5
    %v76 = vld [vmem:[%s75] ss:$8 sm:$0x3]
    %s77 = scalar_lea.vmem %s2, 37
    %v78 = vld [vmem:[%s77] ss:$8 sm:$0x3]
    %s79 = sld [smem:[#allocation3 + $0x5]]
    %v80 = vstv %s79
    %v81 = vmul.f32 %v76, %v80
    %v82 = vmul.f32 %v78, %v80
    %v83 = vadd.f32 %v73, %v81
    %v84 = vadd.f32 %v74, %v82
    %s85 = scalar_lea.vmem %s2, 6
    %v86 = vld [vmem:[%s85] ss:$8 sm:$0x3]
    %s87 = scalar_lea.vmem %s2, 38
    %v88 = vld [vmem:[%s87] ss:$8 sm:$0x3]
    %s89 = sld [smem:[#allocation3 + $0x6]]
    %v90 = vstv %s89
    %v91 = vmul.f32 %v86, %v90
    %v92 = vmul.f32 %v88, %v90
    %v93 = vadd.f32 %v83, %v91
    %v94 = vadd.f32 %v84, %v92
    %s95 = scalar_lea.vmem %s2, 7
    %v96 = vld [vmem:[%s95] ss:$8 sm:$0x3]
    %s97 = scalar_lea.vmem %s2, 39
    %v98 = vld [vmem:[%s97] ss:$8 sm:$0x3]
    %s99 = sld [smem:[#allocation3 + $0x7]]
    %v100 = vstv %s99
    %v101 = vmul.f32 %v96, %v100
    %v102 = vmul.f32 %v98, %v100
    %v103 = vadd.f32 %v93, %v101
    %v104 = vadd.f32 %v94, %v102
    %s105 = scalar_lea.vmem %s2, 16
    %v106 = vld [vmem:[%s105] ss:$8 sm:$0x3]
    %s107 = scalar_lea.vmem %s2, 48
    %v108 = vld [vmem:[%s107] ss:$8 sm:$0x3]
    %s109 = sld [smem:[#allocation3 + $0x8]]
    %v110 = vstv %s109
    %v111 = vmul.f32 %v106, %v110
    %v112 = vmul.f32 %v108, %v110
    %v113 = vadd.f32 %v103, %v111
    %v114 = vadd.f32 %v104, %v112
    %s115 = scalar_lea.vmem %s2, 17
    %v116 = vld [vmem:[%s115] ss:$8 sm:$0x3]
    %s117 = scalar_lea.vmem %s2, 49
    %v118 = vld [vmem:[%s117] ss:$8 sm:$0x3]
    %s119 = sld [smem:[#allocation3 + $0x9]]
    %v120 = vstv %s119
    %v121 = vmul.f32 %v116, %v120
    %v122 = vmul.f32 %v118, %v120
    %v123 = vadd.f32 %v113, %v121
    %v124 = vadd.f32 %v114, %v122
    %s125 = scalar_lea.vmem %s2, 18
    %v126 = vld [vmem:[%s125] ss:$8 sm:$0x3]
    %s127 = scalar_lea.vmem %s2, 50
    %v128 = vld [vmem:[%s127] ss:$8 sm:$0x3]
    %s129 = sld [smem:[#allocation3 + $0xa]]
    %v130 = vstv %s129
    %v131 = vmul.f32 %v126, %v130
    %v132 = vmul.f32 %v128, %v130
    %v133 = vadd.f32 %v123, %v131
    %v134 = vadd.f32 %v124, %v132
    %s135 = scalar_lea.vmem %s2, 19
    %v136 = vld [vmem:[%s135] ss:$8 sm:$0x3]
    %s137 = scalar_lea.vmem %s2, 51
    %v138 = vld [vmem:[%s137] ss:$8 sm:$0x3]
    %s139 = sld [smem:[#allocation3 + $0xb]]
    %v140 = vstv %s139
    %v141 = vmul.f32 %v136, %v140
    %v142 = vmul.f32 %v138, %v140
    %v143 = vadd.f32 %v133, %v141
    %v144 = vadd.f32 %v134, %v142
    %s145 = scalar_lea.vmem %s2, 20
    %v146 = vld [vmem:[%s145] ss:$8 sm:$0x3]
    %s147 = scalar_lea.vmem %s2, 52
    %v148 = vld [vmem:[%s147] ss:$8 sm:$0x3]
    %s149 = sld [smem:[#allocation3 + $0xc]]
    %v150 = vstv %s149
    %v151 = vmul.f32 %v146, %v150
    %v152 = vmul.f32 %v148, %v150
    %v153 = vadd.f32 %v143, %v151
    %v154 = vadd.f32 %v144, %v152
    %s155 = scalar_lea.vmem %s2, 21
    %v156 = vld [vmem:[%s155] ss:$8 sm:$0x3]
    %s157 = scalar_lea.vmem %s2, 53
    %v158 = vld [vmem:[%s157] ss:$8 sm:$0x3]
    %s159 = sld [smem:[#allocation3 + $0xd]]
    %v160 = vstv %s159
    %v161 = vmul.f32 %v156, %v160
    %v162 = vmul.f32 %v158, %v160
    %v163 = vadd.f32 %v153, %v161
    %v164 = vadd.f32 %v154, %v162
    %s165 = scalar_lea.vmem %s2, 22
    %v166 = vld [vmem:[%s165] ss:$8 sm:$0x3]
    %s167 = scalar_lea.vmem %s2, 54
    %v168 = vld [vmem:[%s167] ss:$8 sm:$0x3]
    %s169 = sld [smem:[#allocation3 + $0xe]]
    %v170 = vstv %s169
    %v171 = vmul.f32 %v166, %v170
    %v172 = vmul.f32 %v168, %v170
    %v173 = vadd.f32 %v163, %v171
    %v174 = vadd.f32 %v164, %v172
    %s175 = scalar_lea.vmem %s2, 23
    %v176 = vld [vmem:[%s175] ss:$8 sm:$0x3]
    %s177 = scalar_lea.vmem %s2, 55
    %v178 = vld [vmem:[%s177] ss:$8 sm:$0x3]
    %s179 = sld [smem:[#allocation3 + $0xf]]
    %v180 = vstv %s179
    %v181 = vmul.f32 %v176, %v180
    %v182 = vmul.f32 %v178, %v180
    %v183 = vadd.f32 %v173, %v181
    %v184 = vadd.f32 %v174, %v182
    %v185 = vmul.f32 %v183, 0.25
    %v186 = vmul.f32 %v184, 0.25
    %s187 = sld [smem:[#allocation2]]
    %v188 = vstv %s187
    %v189 = vadd.f32 %v185, %v188
    %v190 = vadd.f32 %v186, %v188
    %v191 = vxor.u32 %v189, 2147483648
    %v192 = vxor.u32 %v190, 2147483648
    %v193 = vmul.f32 %v191, 1.442695
    %v194 = vpow.pop %v193
    %v195 = vmul.f32 %v192, 1.442695
    %v196 = vpow.pop %v195
    %v197 = vadd.f32 %v194, 1.0
    %v198 = vadd.f32 %v196, 1.0
    %v199 = vrcp.pop %v197
    %v200 = vmul.f32 %v197, %v199
    %v201 = vsub.f32 1.0, %v200
    %v202 = vmul.f32 %v199, %v201
    %v203 = vadd.f32 %v199, %v202
    %vm204 = vweird.f32 %v197
    %vm205 = vweird.f32 %v199
    %vm206 = vmor %vm204, %vm205
    %v207 = vsel %vm206, %v199, %v203
    %v208 = vand.u32 2147483647, %v197
    %vm209 = vcmp.eq.f32.partialorder %v208, 8.507059e+37
    %v210 = vand.u32 %v197, 2147483648
    %v211 = vor.u32 1.1754944e-38, %v210
    %v212 = vsel %vm209, %v211, %v207
    %v213 = vmul.f32 1.0, %v212
    %v214 = vrcp.pop %v198
    %v215 = vmul.f32 %v198, %v214
    %v216 = vsub.f32 1.0, %v215
    %v217 = vmul.f32 %v214, %v216
    %v218 = vadd.f32 %v214, %v217
    %vm219 = vweird.f32 %v198
    %vm220 = vweird.f32 %v214
    %vm221 = vmor %vm219, %vm220
    %v222 = vsel %vm221, %v214, %v218
    %v223 = vand.u32 2147483647, %v198
    %vm224 = vcmp.eq.f32.partialorder %v223, 8.507059e+37
    %v225 = vand.u32 %v198, 2147483648
    %v226 = vor.u32 1.1754944e-38, %v225
    %v227 = vsel %vm224, %v226, %v222
    %v228 = vmul.f32 1.0, %v227
    %v229 = vlaneseq
    %vm230 = vcmp.ge.s32.totalorder %v229, 0
    %vm231 = vcmp.lt.s32.totalorder %v229, 256
    %vm232 = vmand %vm230, %vm231
    %233 = vst.msk [vmem:[%s3] sm:$0x3] %vm232, %v213
    %234 = vst.msk [vmem:[%s3 + $0x2] sm:$0x3] %vm232, %v228
    // Predicated region
    $region18: #{alpha_forward.1} parent=1 // pred_check
      _
    $region19: #{alpha_forward.1} parent=1 // pred_check_branch
      %236 = sbr.rel (0) target = $region21
    $region20: #{alpha_forward.1} parent=1 // pred_region
      _
    $region21: #{alpha_forward.1} parent=1 // pred_fallthru
      _
    // Predicated region
    $region22: #{alpha_forward.1} parent=1 // pred_check
      _
    $region23: #{alpha_forward.1} parent=1 // pred_check_branch
      %238 = sbr.rel (0) target = $region25
    $region24: #{alpha_forward.1} parent=1 // pred_region
      _
    $region25: #{alpha_forward.1} parent=1 // pred_fallthru
      _
    %239 = vsyncpa [#allocation4], 1

</llo_original>
